<compile_context>
chip_gen: v6e
topology: v6e:2x2x1
jax: 0.10.0
libtpu: 0.0.40
codegen_flags: <defaults>
</compile_context>

<pallas_src>
import functools

import jax
import jax.numpy as jnp
from jax.experimental import pallas as pl
from jax.experimental.pallas import tpu as pltpu


def _round_up(x: int, m: int) -> int:
    return ((x + m - 1) // m) * m


# ----------------------------------------------------------------------------
# Pallas kernel: one pixel tile -> fused per-pixel heads + partial pool sum
# ----------------------------------------------------------------------------
def _trufor_kernel(
    x_ref,        # (TILE_P, C)  raw pixels (divide-by-256 folded into w1)
    w1_ref,       # (C, D)       1x1-conv feature mixer (pre-scaled by 1/256)
    b1_ref,       # (1, D)
    wh_ref,       # (D, 4)       fused heads  [pred(2) | conf(1) | npp(1)]
    bh_ref,       # (1, 4)
    heads_ref,    # (TILE_P, 4)  fused per-pixel head outputs
    psum_ref,     # (1, 1, D)    per-tile partial sum for the global pool
    *,
    true_p: int,
    tile_p: int,
):
    pid = pl.program_id(0)

    x = x_ref[...]                                                   # (TILE_P, C)

    # 1x1 conv over channels == matmul on flattened pixels (MXU) + ReLU (VPU).
    feat = jnp.dot(x, w1_ref[...], preferred_element_type=jnp.float32)
    feat = jnp.maximum(feat + b1_ref[...], 0.0)                      # (TILE_P, D)

    # Fused per-pixel heads: single N=4 matmul, single output stream.
    heads_ref[...] = (
        jnp.dot(feat, wh_ref[...], preferred_element_type=jnp.float32)
        + bh_ref[...]
    )

    # Masked partial sum for the global average pool (exclude padded rows of
    # the last tile).  Mean is finished in the wrapper with the true P.
    row = pid * tile_p + jax.lax.broadcasted_iota(jnp.int32, (tile_p, 1), 0)
    valid = (row < true_p).astype(feat.dtype)                        # (TILE_P, 1)
    psum = jnp.sum(feat * valid, axis=0, keepdims=True)              # (1, D)
    psum_ref[...] = psum.reshape(psum_ref.shape)                     # (1, 1, D)


# ----------------------------------------------------------------------------
# Synthetic stand-in weights
# ----------------------------------------------------------------------------
def make_params(num_channels: int, hidden: int):
    k = jax.random.PRNGKey(42)
    k1, k2, k3, k4, k5 = jax.random.split(k, 5)
    scale = 0.1
    return dict(
        w1=scale * jax.random.normal(k1, (num_channels, hidden), jnp.float32),
        b1=jnp.zeros((1, hidden), jnp.float32),
        wp=scale * jax.random.normal(k2, (hidden, 2), jnp.float32),
        bp=jnp.zeros((1, 2), jnp.float32),
        wc=scale * jax.random.normal(k3, (hidden, 1), jnp.float32),
        bc=jnp.zeros((1, 1), jnp.float32),
        wn=scale * jax.random.normal(k4, (hidden, 1), jnp.float32),
        bn=jnp.zeros((1, 1), jnp.float32),
        wd=scale * jax.random.normal(k5, (hidden, 1), jnp.float32),
        bd=jnp.zeros((1, 1), jnp.float32),
    )


# ----------------------------------------------------------------------------
# Wrapper: preprocessing + pallas_call + postprocessing
# ----------------------------------------------------------------------------
def trufor_forward(x_hwc: jax.Array, params: dict, *, tile_p: int = 1024):
    """
    x_hwc : (H, W, C) float image, values roughly in [0, 255].
    Returns (label, probability, pred, conf, det, npp); pred/conf/npp in NCHW.
    `label` is returned as a jnp int32 array (jit-safe; cast to int at host).
    """
    H, W, C = x_hwc.shape
    P = H * W
    D = params["w1"].shape[1]

    # --- preprocessing ---
    # PyTorch: transpose HWC->CHW, expand batch, /256.  The NCHW->pixels-major
    # round trip is an identity, so we keep a single reshape and fold the
    # /256.0 scale into w1 (mathematically exact for this model).
    x_flat = x_hwc.reshape(P, C).astype(jnp.float32)
    w1_scaled = params["w1"] * jnp.float32(1.0 / 256.0)

    # Fused per-pixel head weights: [pred(2) | conf(1) | npp(1)] -> (D, 4)
    w_heads = jnp.concatenate(
        [params["wp"], params["wc"], params["wn"]], axis=1)
    b_heads = jnp.concatenate(
        [params["bp"], params["bc"], params["bn"]], axis=1)
    n_heads = w_heads.shape[1]

    # --- pixel tiling ---
    tile_p = _round_up(max(8, min(tile_p, _round_up(P, 8))), 8)
    p_pad = _round_up(P, tile_p)
    num_tiles = pl.cdiv(p_pad, tile_p)
    if p_pad != P:
        x_flat = jnp.pad(x_flat, ((0, p_pad - P), (0, 0)))

    kernel = functools.partial(_trufor_kernel, true_p=P, tile_p=tile_p)

    grid_spec = pltpu.PrefetchScalarGridSpec(
        num_scalar_prefetch=0,
        grid=(num_tiles,),
        in_specs=[
            pl.BlockSpec((tile_p, C), lambda i: (i, 0)),      # x tile (pipelined)
            pl.BlockSpec((C, D), lambda i: (0, 0)),           # w1   (resident)
            pl.BlockSpec((1, D), lambda i: (0, 0)),           # b1   (resident)
            pl.BlockSpec((D, n_heads), lambda i: (0, 0)),     # fused head W
            pl.BlockSpec((1, n_heads), lambda i: (0, 0)),     # fused head b
        ],
        out_specs=[
            pl.BlockSpec((tile_p, n_heads), lambda i: (i, 0)),   # fused heads
            pl.BlockSpec((1, 1, D), lambda i: (i, 0, 0)),        # partial sums
        ],
    )

    heads, psum = pl.pallas_call(
        kernel,
        out_shape=(
            jax.ShapeDtypeStruct((p_pad, n_heads), jnp.float32),
            jax.ShapeDtypeStruct((num_tiles, 1, D), jnp.float32),
        ),
        grid_spec=grid_spec,
        compiler_params=pltpu.CompilerParams(
            dimension_semantics=("parallel",),       # shards across TCs on v7x
            vmem_limit_bytes=32 * 1024 * 1024,       # fits v5e/v6e/v7x scoped VMEM
        ),
    )(x_flat, w1_scaled, params["b1"], w_heads, b_heads)

    # --- postprocessing (tiny; stays in plain JAX) ---
    heads = heads[:P]
    pred_f = heads[:, 0:2]
    conf_f = jax.nn.sigmoid(heads[:, 2:3])
    npp_f = heads[:, 3:4]

    # Global average pool + detection head + sigmoid (matches the reference
    # `probability = torch.sigmoid(det)` and the > 0.5 threshold).
    pooled = jnp.sum(psum.reshape(num_tiles, D), axis=0, keepdims=True) / P
    det = jnp.dot(pooled, params["wd"]) + params["bd"]               # (1, 1)
    probability = jax.nn.sigmoid(det)[0, 0]
    label = (probability > 0.5).astype(jnp.int32)                    # jit-safe

    # back to NCHW like the PyTorch model outputs
    pred = jnp.transpose(pred_f.reshape(1, H, W, 2), (0, 3, 1, 2))
    conf = jnp.transpose(conf_f.reshape(1, H, W, 1), (0, 3, 1, 2))
    npp = jnp.transpose(npp_f.reshape(1, H, W, 1), (0, 3, 1, 2))

    return label, probability, pred, conf, det, npp


if __name__ == "__main__":
    # Small deterministic "image": 16x16 spatial, 4 channels, values in [0, 255]
    key = jax.random.PRNGKey(0)
    x = jax.random.uniform(key, (16, 16, 4), jnp.float32,
                           minval=0.0, maxval=255.0)

    params = make_params(num_channels=4, hidden=32)

    label, probability, pred, conf, det, npp = trufor_forward(x, params)
    jax.block_until_ready((label, probability, pred, conf, det, npp))

    assert pred.shape == (1, 2, 16, 16)
    assert conf.shape == (1, 1, 16, 16)
    assert npp.shape == (1, 1, 16, 16)
    assert det.shape == (1, 1)
    assert float(probability) >= 0.0 and float(probability) <= 1.0
    assert int(label) in (0, 1)
    assert bool(jnp.all(jnp.isfinite(pred)))
    assert bool(jnp.all((conf >= 0.0) & (conf <= 1.0)))
    print("KERNEL_OK")
</pallas_src>

<mosaic_0001>
module attributes {stable_mosaic.version = 11 : i64} {
  func.func @_trufor_kernel(%arg0: i32, %arg1: memref<256x4xf32, #tpu.memory_space<vmem>>, %arg2: memref<4x32xf32, #tpu.memory_space<vmem>>, %arg3: memref<1x32xf32, #tpu.memory_space<vmem>>, %arg4: memref<32x4xf32, #tpu.memory_space<vmem>>, %arg5: memref<1x4xf32, #tpu.memory_space<vmem>>, %arg6: memref<256x4xf32, #tpu.memory_space<vmem>>, %arg7: memref<1x1x32xf32, #tpu.memory_space<vmem>>) attributes {dimension_semantics = [#tpu.dimension_semantics<parallel>], iteration_bounds = array<i64: 1>, scalar_prefetch = 0 : i64, scratch_operands = 0 : i64, tpu.core_type = #tpu.core_type<tc>, window_params = [{transform_indices = @transform_0, window_bounds = array<i64: 256, 4>}, {pipeline_mode = #tpu.pipeline_mode<synchronous>, transform_indices = @transform_1, window_bounds = array<i64: 4, 32>}, {pipeline_mode = #tpu.pipeline_mode<synchronous>, transform_indices = @transform_2, window_bounds = array<i64: 1, 32>}, {pipeline_mode = #tpu.pipeline_mode<synchronous>, transform_indices = @transform_3, window_bounds = array<i64: 32, 4>}, {pipeline_mode = #tpu.pipeline_mode<synchronous>, transform_indices = @transform_4, window_bounds = array<i64: 1, 4>}, {transform_indices = @transform_5, window_bounds = array<i64: 256, 4>}, {transform_indices = @transform_6, window_bounds = array<i64: 1, 1, 32>}]} {
    %c0 = arith.constant 0 : index
    %c0_0 = arith.constant 0 : index
    %0 = vector.load %arg1[%c0, %c0_0] : memref<256x4xf32, #tpu.memory_space<vmem>>, vector<256x4xf32>
    %c0_1 = arith.constant 0 : index
    %c0_2 = arith.constant 0 : index
    %1 = vector.load %arg2[%c0_1, %c0_2] : memref<4x32xf32, #tpu.memory_space<vmem>>, vector<4x32xf32>
    %cst = arith.constant dense<0.000000e+00> : vector<256x32xf32>
    %2 = tpu.matmul %0, %1, %cst {dimension_numbers = #tpu.dot_dimension_numbers<[1], [0], [0], [1], [0, 0, 1, 1], [], []>} : vector<256x4xf32>, vector<4x32xf32>, vector<256x32xf32> -> vector<256x32xf32>
    %c0_3 = arith.constant 0 : index
    %c0_4 = arith.constant 0 : index
    %3 = vector.load %arg3[%c0_3, %c0_4] : memref<1x32xf32, #tpu.memory_space<vmem>>, vector<1x32xf32>
    %4 = vector.broadcast %3 : vector<1x32xf32> to vector<256x32xf32>
    %5 = arith.addf %2, %4 : vector<256x32xf32>
    %cst_5 = arith.constant 0.000000e+00 : f32
    %6 = vector.broadcast %cst_5 : f32 to vector<256x32xf32>
    %7 = arith.maximumf %5, %6 : vector<256x32xf32>
    %c0_6 = arith.constant 0 : index
    %c0_7 = arith.constant 0 : index
    %8 = vector.load %arg4[%c0_6, %c0_7] : memref<32x4xf32, #tpu.memory_space<vmem>>, vector<32x4xf32>
    %cst_8 = arith.constant dense<0.000000e+00> : vector<256x4xf32>
    %9 = tpu.matmul %7, %8, %cst_8 {dimension_numbers = #tpu.dot_dimension_numbers<[1], [0], [0], [1], [0, 0, 1, 1], [], []>} : vector<256x32xf32>, vector<32x4xf32>, vector<256x4xf32> -> vector<256x4xf32>
    %c0_9 = arith.constant 0 : index
    %c0_10 = arith.constant 0 : index
    %10 = vector.load %arg5[%c0_9, %c0_10] : memref<1x4xf32, #tpu.memory_space<vmem>>, vector<1x4xf32>
    %11 = vector.broadcast %10 : vector<1x4xf32> to vector<256x4xf32>
    %12 = arith.addf %9, %11 : vector<256x4xf32>
    %c0_11 = arith.constant 0 : index
    %c0_12 = arith.constant 0 : index
    %13 = vector.load %arg6[%c0_11, %c0_12] : memref<256x4xf32, #tpu.memory_space<vmem>>, vector<256x4xf32>
    tpu.vector_store %arg6[%c0_11, %c0_12], %12 {strides = array<i32>} : memref<256x4xf32, #tpu.memory_space<vmem>>, vector<256x4xf32>,
    %c256_i32 = arith.constant 256 : i32
    %14 = arith.muli %arg0, %c256_i32 : i32
    %15 = tpu.iota {dimensions = array<i32: 0>} : vector<256x1xi32>
    %16 = vector.broadcast %14 : i32 to vector<256x1xi32>
    %17 = arith.addi %16, %15 : vector<256x1xi32>
    %c256_i32_13 = arith.constant 256 : i32
    %18 = vector.broadcast %c256_i32_13 : i32 to vector<256x1xi32>
    %19 = arith.cmpi slt, %17, %18 : vector<256x1xi32>
    %20 = arith.extui %19 : vector<256x1xi1> to vector<256x1xi32>
    %21 = arith.sitofp %20 : vector<256x1xi32> to vector<256x1xf32>
    %22 = vector.broadcast %21 : vector<256x1xf32> to vector<256x32xf32>
    %23 = arith.mulf %7, %22 : vector<256x32xf32>
    %cst_14 = arith.constant dense<0.000000e+00> : vector<32xf32>
    %24 = vector.multi_reduction <add>, %23, %cst_14 [0] : vector<256x32xf32> to vector<32xf32>
    %25 = vector.shape_cast %24 : vector<32xf32> to vector<1x32xf32>
    %26 = vector.shape_cast %25 : vector<1x32xf32> to vector<1x1x32xf32>
    %c0_15 = arith.constant 0 : index
    %c0_16 = arith.constant 0 : index
    %c0_17 = arith.constant 0 : index
    %27 = vector.load %arg7[%c0_15, %c0_16, %c0_17] : memref<1x1x32xf32, #tpu.memory_space<vmem>>, vector<1x1x32xf32>
    tpu.vector_store %arg7[%c0_15, %c0_16, %c0_17], %26 {strides = array<i32>} : memref<1x1x32xf32, #tpu.memory_space<vmem>>, vector<1x1x32xf32>,
    return
  }
  func.func @transform_0(%arg0: i32) -> (i32, i32) {
    %c0_i32 = arith.constant 0 : i32
    %c0_i32_0 = arith.constant 0 : i32
    return %arg0, %c0_i32 : i32, i32
  }
  func.func @transform_1(%arg0: i32) -> (i32, i32) {
    %c0_i32 = arith.constant 0 : i32
    %c0_i32_0 = arith.constant 0 : i32
    %c0_i32_1 = arith.constant 0 : i32
    return %c0_i32, %c0_i32_0 : i32, i32
  }
  func.func @transform_2(%arg0: i32) -> (i32, i32) {
    %c0_i32 = arith.constant 0 : i32
    %c0_i32_0 = arith.constant 0 : i32
    %c0_i32_1 = arith.constant 0 : i32
    return %c0_i32, %c0_i32_0 : i32, i32
  }
  func.func @transform_3(%arg0: i32) -> (i32, i32) {
    %c0_i32 = arith.constant 0 : i32
    %c0_i32_0 = arith.constant 0 : i32
    %c0_i32_1 = arith.constant 0 : i32
    return %c0_i32, %c0_i32_0 : i32, i32
  }
  func.func @transform_4(%arg0: i32) -> (i32, i32) {
    %c0_i32 = arith.constant 0 : i32
    %c0_i32_0 = arith.constant 0 : i32
    %c0_i32_1 = arith.constant 0 : i32
    return %c0_i32, %c0_i32_0 : i32, i32
  }
  func.func @transform_5(%arg0: i32) -> (i32, i32) {
    %c0_i32 = arith.constant 0 : i32
    %c0_i32_0 = arith.constant 0 : i32
    return %arg0, %c0_i32 : i32, i32
  }
  func.func @transform_6(%arg0: i32) -> (i32, i32, i32) {
    %c0_i32 = arith.constant 0 : i32
    %c0_i32_0 = arith.constant 0 : i32
    %c0_i32_1 = arith.constant 0 : i32
    return %arg0, %c0_i32, %c0_i32_0 : i32, i32, i32
  }
}

</mosaic_0001>

<llo_original>
// kernel: tpu_custom_call.1
$region0: #{tpu_custom_call.1}
  #allocation0 [shape = 'u32[]', space=smem, size = 0x4, offset = 0x4, fixed_abs, tag = 'smem constant byte address 0x4 - core index']
  #allocation1 [shape = 'u32[144,128]{1,0:T(1,128)}', space=vmem, size = 0x12000, scoped, tag = 'internal scratch']
  %s0 = inlined_call_operand.vmem [shape: f32[256,4], index: 0, kind: input, shape index: {}]
  %s1 = inlined_call_operand.vmem [shape: f32[4,32], index: 1, kind: input, shape index: {}]
  %s2 = inlined_call_operand.vmem [shape: f32[1,32], index: 2, kind: input, shape index: {}]
  %s3 = inlined_call_operand.vmem [shape: f32[32,4], index: 3, kind: input, shape index: {}]
  %s4 = inlined_call_operand.vmem [shape: f32[1,4], index: 4, kind: input, shape index: {}]
  %s5 = inlined_call_operand.vmem [shape: f32[256,4], index: 5, kind: output, shape index: {0}]
  %s6 = inlined_call_operand.hbm [shape: f32[1,1,32], index: 6, kind: output, shape index: {1}]
  %7 = xla_tuple %s5, %s6
  %s8 = sld [smem:[#allocation0]]
  $region38: #{tpu_custom_call.1} parent=0
    _
  %s10 = ssub.s32 1, %s8
  %s11 = scalar_select 0, %s10, %s8
  $region1: #{tpu_custom_call.1} parent=0
    #allocation2 [shape = 'u8[512]{0}', space=vmem, size = 0x400, scoped, tag = 'output window, operand 1, single buffered']
    #allocation3 [shape = 's32[1]{0}', space=sflag, size = 0x4, scoped, tag = 'scoped memory for tpu_custom_call.1']
    %12 = vsyncpa [#allocation3], 0
    // Predicated region
    $region2: #{tpu_custom_call.1} parent=1 // pred_check
      _
    $region3: #{tpu_custom_call.1} parent=1 // pred_check_branch
      %14 = sbr.rel (0) target = $region5
    $region4: #{tpu_custom_call.1} parent=1 // pred_region
      _
    $region5: #{tpu_custom_call.1} parent=1 // pred_fallthru
      _
    // Predicated region
    $region6: #{tpu_custom_call.1} parent=1 // pred_check
      _
    $region7: #{tpu_custom_call.1} parent=1 // pred_check_branch
      %16 = sbr.rel (0) target = $region9
    $region8: #{tpu_custom_call.1} parent=1 // pred_region
      _
    $region9: #{tpu_custom_call.1} parent=1 // pred_fallthru
      _
    // Predicated region
    $region10: #{tpu_custom_call.1} parent=1 // pred_check
      _
    $region11: #{tpu_custom_call.1} parent=1 // pred_check_branch
      %18 = sbr.rel (0) target = $region13
    $region12: #{tpu_custom_call.1} parent=1 // pred_region
      _
    $region13: #{tpu_custom_call.1} parent=1 // pred_fallthru
      _
    // Predicated region
    $region14: #{tpu_custom_call.1} parent=1 // pred_check
      _
    $region15: #{tpu_custom_call.1} parent=1 // pred_check_branch
      %20 = sbr.rel (0) target = $region17
    $region16: #{tpu_custom_call.1} parent=1 // pred_region
      _
    $region17: #{tpu_custom_call.1} parent=1 // pred_fallthru
      _
    // Predicated region
    $region18: #{tpu_custom_call.1} parent=1 // pred_check
      _
    $region19: #{tpu_custom_call.1} parent=1 // pred_check_branch
      %22 = sbr.rel (0) target = $region21
    $region20: #{tpu_custom_call.1} parent=1 // pred_region
      _
    $region21: #{tpu_custom_call.1} parent=1 // pred_fallthru
      _
    %v23 = vld [vmem:[%s0] sm:$0xff]
    %v24 = vld [vmem:[%s0 + $0x8] sm:$0xff]
    %v25 = vld [vmem:[%s0 + $0x10] sm:$0xff]
    %v26 = vld [vmem:[%s0 + $0x18] sm:$0xff]
    %v27 = vld [vmem:[%s0 + $0x20] sm:$0xff]
    %v28 = vld [vmem:[%s0 + $0x28] sm:$0xff]
    %v29 = vld [vmem:[%s0 + $0x30] sm:$0xff]
    %v30 = vld [vmem:[%s0 + $0x38] sm:$0xff]
    %v31 = vld [vmem:[%s0 + $0x40] sm:$0xff]
    %v32 = vld [vmem:[%s0 + $0x48] sm:$0xff]
    %v33 = vld [vmem:[%s0 + $0x50] sm:$0xff]
    %v34 = vld [vmem:[%s0 + $0x58] sm:$0xff]
    %v35 = vld [vmem:[%s0 + $0x60] sm:$0xff]
    %v36 = vld [vmem:[%s0 + $0x68] sm:$0xff]
    %v37 = vld [vmem:[%s0 + $0x70] sm:$0xff]
    %v38 = vld [vmem:[%s0 + $0x78] sm:$0xff]
    %v39 = vld [vmem:[%s0 + $0x80] sm:$0xff]
    %v40 = vld [vmem:[%s0 + $0x88] sm:$0xff]
    %v41 = vld [vmem:[%s0 + $0x90] sm:$0xff]
    %v42 = vld [vmem:[%s0 + $0x98] sm:$0xff]
    %v43 = vld [vmem:[%s0 + $0xa0] sm:$0xff]
    %v44 = vld [vmem:[%s0 + $0xa8] sm:$0xff]
    %v45 = vld [vmem:[%s0 + $0xb0] sm:$0xff]
    %v46 = vld [vmem:[%s0 + $0xb8] sm:$0xff]
    %v47 = vld [vmem:[%s0 + $0xc0] sm:$0xff]
    %v48 = vld [vmem:[%s0 + $0xc8] sm:$0xff]
    %v49 = vld [vmem:[%s0 + $0xd0] sm:$0xff]
    %v50 = vld [vmem:[%s0 + $0xd8] sm:$0xff]
    %v51 = vld [vmem:[%s0 + $0xe0] sm:$0xff]
    %v52 = vld [vmem:[%s0 + $0xe8] sm:$0xff]
    %v53 = vld [vmem:[%s0 + $0xf0] sm:$0xff]
    %v54 = vld [vmem:[%s0 + $0xf8] sm:$0xff]
    %v55 = vld [vmem:[%s1] sm:$0xf]
    %v56 = vld [vmem:[%s2] sm:$0x1]
    %v58 = vlaneseq
    %v59 = vshrl.u32 %v58, 7
    %v60 = vsub.s32 0, %v59
    %v61 = vrot.slane %v56, %v60
    %vm63 = vcmask 31744
    %v65 = vsel %vm63, %v23, 0
    %v68 = vsel %vm63, %v24, 0
    %v71 = vsel %vm63, %v25, 0
    %v74 = vsel %vm63, %v26, 0
    %v77 = vsel %vm63, %v27, 0
    %v80 = vsel %vm63, %v28, 0
    %v83 = vsel %vm63, %v29, 0
    %v86 = vsel %vm63, %v30, 0
    %v89 = vsel %vm63, %v31, 0
    %v92 = vsel %vm63, %v32, 0
    %v95 = vsel %vm63, %v33, 0
    %v98 = vsel %vm63, %v34, 0
    %v101 = vsel %vm63, %v35, 0
    %v104 = vsel %vm63, %v36, 0
    %v107 = vsel %vm63, %v37, 0
    %v110 = vsel %vm63, %v38, 0
    %v113 = vsel %vm63, %v39, 0
    %v116 = vsel %vm63, %v40, 0
    %v119 = vsel %vm63, %v41, 0
    %v122 = vsel %vm63, %v42, 0
    %v125 = vsel %vm63, %v43, 0
    %v128 = vsel %vm63, %v44, 0
    %v131 = vsel %vm63, %v45, 0
    %v134 = vsel %vm63, %v46, 0
    %v137 = vsel %vm63, %v47, 0
    %v140 = vsel %vm63, %v48, 0
    %v143 = vsel %vm63, %v49, 0
    %v146 = vsel %vm63, %v50, 0
    %v149 = vsel %vm63, %v51, 0
    %v152 = vsel %vm63, %v52, 0
    %v155 = vsel %vm63, %v53, 0
    %v158 = vsel %vm63, %v54, 0
    %vm160 = vcmask 1043456
    %v162 = vsel %vm160, %v55, 0
    %164 = vmatprep.subr.mxu0 0.0
    %165 = vmatpush1.msra.mxu0 0.0
    %166 = vmatprep.subr.mxu0 0.0
    %167 = vmatpush1.msra.mxu0 0.0
    %168 = vmatprep.subr.mxu0 0.0
    %169 = vmatpush1.msra.mxu0 0.0
    %170 = vmatprep.subr.mxu0 0.0
    %171 = vmatpush1.msra.mxu0 0.0
    %172 = vmatprep.subr.mxu0 0.0
    %173 = vmatpush1.msra.mxu0 0.0
    %174 = vmatprep.subr.mxu0 0.0
    %175 = vmatpush1.msra.mxu0 0.0
    %176 = vmatprep.subr.mxu0 0.0
    %177 = vmatpush1.msra.mxu0 0.0
    %178 = vmatprep.subr.mxu0 0.0
    %179 = vmatpush1.msra.mxu0 0.0
    %180 = vmatprep.subr.mxu0 0.0
    %181 = vmatpush1.msra.mxu0 0.0
    %182 = vmatprep.subr.mxu0 0.0
    %183 = vmatpush1.msra.mxu0 0.0
    %184 = vmatprep.subr.mxu0 0.0
    %185 = vmatpush1.msra.mxu0 0.0
    %186 = vmatprep.subr.mxu0 0.0
    %187 = vmatpush1.msra.mxu0 0.0
    %188 = vmatprep.subr.mxu0 0.0
    %189 = vmatpush1.msra.mxu0 0.0
    %190 = vmatprep.subr.mxu0 0.0
    %191 = vmatpush1.msra.mxu0 0.0
    %192 = vmatprep.subr.mxu0 0.0
    %193 = vmatpush1.msra.mxu0 0.0
    %194 = vmatprep.subr.mxu0 0.0
    %195 = vmatpush1.msra.mxu0 %v162
    %196 = vmatprep.subr.mxu0 0.0
    %197 = vmatpush2.msra.mxu0 0.0
    %198 = vmatprep.subr.mxu0 0.0
    %199 = vmatpush2.msra.mxu0 0.0
    %200 = vmatprep.subr.mxu0 0.0
    %201 = vmatpush2.msra.mxu0 0.0
    %202 = vmatprep.subr.mxu0 0.0
    %203 = vmatpush2.msra.mxu0 0.0
    %204 = vmatprep.subr.mxu0 0.0
    %205 = vmatpush2.msra.mxu0 0.0
    %206 = vmatprep.subr.mxu0 0.0
    %207 = vmatpush2.msra.mxu0 0.0
    %208 = vmatprep.subr.mxu0 0.0
    %209 = vmatpush2.msra.mxu0 0.0
    %210 = vmatprep.subr.mxu0 0.0
    %211 = vmatpush2.msra.mxu0 0.0
    %212 = vmatprep.subr.mxu0 0.0
    %213 = vmatpush2.msra.mxu0 0.0
    %214 = vmatprep.subr.mxu0 0.0
    %215 = vmatpush2.msra.mxu0 0.0
    %216 = vmatprep.subr.mxu0 0.0
    %217 = vmatpush2.msra.mxu0 0.0
    %218 = vmatprep.subr.mxu0 0.0
    %219 = vmatpush2.msra.mxu0 0.0
    %220 = vmatprep.subr.mxu0 0.0
    %221 = vmatpush2.msra.mxu0 0.0
    %222 = vmatprep.subr.mxu0 0.0
    %223 = vmatpush2.msra.mxu0 0.0
    %224 = vmatprep.subr.mxu0 0.0
    %225 = vmatpush2.msra.mxu0 0.0
    %226 = vmatprep.subr.mxu0 0.0
    %227 = vmatpush2.msra.mxu0 0.0
    %228 = vmatprep.mubr.f32.mxu0 0.0
    %229 = vmatmul.mubr.f32.gmra.mxu0 %v65
    %v230 = vpop.f32.mrf.mxu0
    %v231 = vadd.f32 %v61, %v230
    %v232 = vpop.f32.mrf.mxu0
    %233 = vmatprep.mubr.f32.mxu0 0.0
    %234 = vmatmul.mubr.f32.gmra.mxu0 %v68
    %v235 = vpop.f32.mrf.mxu0
    %v236 = vadd.f32 %v61, %v235
    %v237 = vpop.f32.mrf.mxu0
    %238 = vmatprep.mubr.f32.mxu0 0.0
    %239 = vmatmul.mubr.f32.gmra.mxu0 %v71
    %v240 = vpop.f32.mrf.mxu0
    %v241 = vadd.f32 %v61, %v240
    %v242 = vpop.f32.mrf.mxu0
    %243 = vmatprep.mubr.f32.mxu0 0.0
    %244 = vmatmul.mubr.f32.gmra.mxu0 %v74
    %v245 = vpop.f32.mrf.mxu0
    %v246 = vadd.f32 %v61, %v245
    %v247 = vpop.f32.mrf.mxu0
    %248 = vmatprep.mubr.f32.mxu0 0.0
    %249 = vmatmul.mubr.f32.gmra.mxu0 %v77
    %v250 = vpop.f32.mrf.mxu0
    %v251 = vadd.f32 %v61, %v250
    %v252 = vpop.f32.mrf.mxu0
    %253 = vmatprep.mubr.f32.mxu0 0.0
    %254 = vmatmul.mubr.f32.gmra.mxu0 %v80
    %v255 = vpop.f32.mrf.mxu0
    %v256 = vadd.f32 %v61, %v255
    %v257 = vpop.f32.mrf.mxu0
    %258 = vmatprep.mubr.f32.mxu0 0.0
    %259 = vmatmul.mubr.f32.gmra.mxu0 %v83
    %v260 = vpop.f32.mrf.mxu0
    %v261 = vadd.f32 %v61, %v260
    %v262 = vpop.f32.mrf.mxu0
    %263 = vmatprep.mubr.f32.mxu0 0.0
    %264 = vmatmul.mubr.f32.gmra.mxu0 %v86
    %v265 = vpop.f32.mrf.mxu0
    %v266 = vadd.f32 %v61, %v265
    %v267 = vpop.f32.mrf.mxu0
    %268 = vmatprep.mubr.f32.mxu0 0.0
    %269 = vmatmul.mubr.f32.gmra.mxu0 %v89
    %v270 = vpop.f32.mrf.mxu0
    %v271 = vadd.f32 %v61, %v270
    %v272 = vpop.f32.mrf.mxu0
    %273 = vmatprep.mubr.f32.mxu0 0.0
    %274 = vmatmul.mubr.f32.gmra.mxu0 %v92
    %v275 = vpop.f32.mrf.mxu0
    %v276 = vadd.f32 %v61, %v275
    %v277 = vpop.f32.mrf.mxu0
    %278 = vmatprep.mubr.f32.mxu0 0.0
    %279 = vmatmul.mubr.f32.gmra.mxu0 %v95
    %v280 = vpop.f32.mrf.mxu0
    %v281 = vadd.f32 %v61, %v280
    %v282 = vpop.f32.mrf.mxu0
    %283 = vmatprep.mubr.f32.mxu0 0.0
    %284 = vmatmul.mubr.f32.gmra.mxu0 %v98
    %v285 = vpop.f32.mrf.mxu0
    %v286 = vadd.f32 %v61, %v285
    %v287 = vpop.f32.mrf.mxu0
    %288 = vmatprep.mubr.f32.mxu0 0.0
    %289 = vmatmul.mubr.f32.gmra.mxu0 %v101
    %v290 = vpop.f32.mrf.mxu0
    %v291 = vadd.f32 %v61, %v290
    %v292 = vpop.f32.mrf.mxu0
    %293 = vmatprep.mubr.f32.mxu0 0.0
    %294 = vmatmul.mubr.f32.gmra.mxu0 %v104
    %v295 = vpop.f32.mrf.mxu0
    %v296 = vadd.f32 %v61, %v295
    %v297 = vpop.f32.mrf.mxu0
    %298 = vmatprep.mubr.f32.mxu0 0.0
    %299 = vmatmul.mubr.f32.gmra.mxu0 %v107
    %v300 = vpop.f32.mrf.mxu0
    %v301 = vadd.f32 %v61, %v300
    %v302 = vpop.f32.mrf.mxu0
    %303 = vmatprep.mubr.f32.mxu0 0.0
    %304 = vmatmul.mubr.f32.gmra.mxu0 %v110
    %v305 = vpop.f32.mrf.mxu0
    %v306 = vadd.f32 %v61, %v305
    %v307 = vpop.f32.mrf.mxu0
    %308 = vmatprep.mubr.f32.mxu0 0.0
    %309 = vmatmul.mubr.f32.gmra.mxu0 %v113
    %v310 = vpop.f32.mrf.mxu0
    %v311 = vadd.f32 %v61, %v310
    %v312 = vpop.f32.mrf.mxu0
    %313 = vmatprep.mubr.f32.mxu0 0.0
    %314 = vmatmul.mubr.f32.gmra.mxu0 %v116
    %v315 = vpop.f32.mrf.mxu0
    %v316 = vadd.f32 %v61, %v315
    %v317 = vpop.f32.mrf.mxu0
    %318 = vmatprep.mubr.f32.mxu0 0.0
    %319 = vmatmul.mubr.f32.gmra.mxu0 %v119
    %v320 = vpop.f32.mrf.mxu0
    %v321 = vadd.f32 %v61, %v320
    %v322 = vpop.f32.mrf.mxu0
    %323 = vmatprep.mubr.f32.mxu0 0.0
    %324 = vmatmul.mubr.f32.gmra.mxu0 %v122
    %v325 = vpop.f32.mrf.mxu0
    %v326 = vadd.f32 %v61, %v325
    %v327 = vpop.f32.mrf.mxu0
    %328 = vmatprep.mubr.f32.mxu0 0.0
    %329 = vmatmul.mubr.f32.gmra.mxu0 %v125
    %v330 = vpop.f32.mrf.mxu0
    %v331 = vadd.f32 %v61, %v330
    %v332 = vpop.f32.mrf.mxu0
    %333 = vmatprep.mubr.f32.mxu0 0.0
    %334 = vmatmul.mubr.f32.gmra.mxu0 %v128
    %v335 = vpop.f32.mrf.mxu0
    %v336 = vadd.f32 %v61, %v335
    %v337 = vpop.f32.mrf.mxu0
    %338 = vmatprep.mubr.f32.mxu0 0.0
    %339 = vmatmul.mubr.f32.gmra.mxu0 %v131
    %v340 = vpop.f32.mrf.mxu0
    %v341 = vadd.f32 %v61, %v340
    %v342 = vpop.f32.mrf.mxu0
    %343 = vmatprep.mubr.f32.mxu0 0.0
    %344 = vmatmul.mubr.f32.gmra.mxu0 %v134
    %v345 = vpop.f32.mrf.mxu0
    %v346 = vadd.f32 %v61, %v345
    %v347 = vpop.f32.mrf.mxu0
    %348 = vmatprep.mubr.f32.mxu0 0.0
    %349 = vmatmul.mubr.f32.gmra.mxu0 %v137
    %v350 = vpop.f32.mrf.mxu0
    %v351 = vadd.f32 %v61, %v350
    %v352 = vpop.f32.mrf.mxu0
    %353 = vmatprep.mubr.f32.mxu0 0.0
    %354 = vmatmul.mubr.f32.gmra.mxu0 %v140
    %v355 = vpop.f32.mrf.mxu0
    %v356 = vadd.f32 %v61, %v355
    %v357 = vpop.f32.mrf.mxu0
    %358 = vmatprep.mubr.f32.mxu0 0.0
    %359 = vmatmul.mubr.f32.gmra.mxu0 %v143
    %v360 = vpop.f32.mrf.mxu0
    %v361 = vadd.f32 %v61, %v360
    %v362 = vpop.f32.mrf.mxu0
    %363 = vmatprep.mubr.f32.mxu0 0.0
    %364 = vmatmul.mubr.f32.gmra.mxu0 %v146
    %v365 = vpop.f32.mrf.mxu0
    %v366 = vadd.f32 %v61, %v365
    %v367 = vpop.f32.mrf.mxu0
    %368 = vmatprep.mubr.f32.mxu0 0.0
    %369 = vmatmul.mubr.f32.gmra.mxu0 %v149
    %v370 = vpop.f32.mrf.mxu0
    %v371 = vadd.f32 %v61, %v370
    %v372 = vpop.f32.mrf.mxu0
    %373 = vmatprep.mubr.f32.mxu0 0.0
    %374 = vmatmul.mubr.f32.gmra.mxu0 %v152
    %v375 = vpop.f32.mrf.mxu0
    %v376 = vadd.f32 %v61, %v375
    %v377 = vpop.f32.mrf.mxu0
    %378 = vmatprep.mubr.f32.mxu0 0.0
    %379 = vmatmul.mubr.f32.gmra.mxu0 %v155
    %v380 = vpop.f32.mrf.mxu0
    %v381 = vadd.f32 %v61, %v380
    %v382 = vpop.f32.mrf.mxu0
    %383 = vmatprep.mubr.f32.mxu0 0.0
    %384 = vmatmul.mubr.f32.gmra.mxu0 %v158
    %v385 = vpop.f32.mrf.mxu0
    %v386 = vadd.f32 %v61, %v385
    %v387 = vpop.f32.mrf.mxu0
    %388 = vdwg.mxu0
    %v389 = vmax.f32 %v231, 0.0
    %v390 = vmax.f32 %v236, 0.0
    %v391 = vmax.f32 %v241, 0.0
    %v392 = vmax.f32 %v246, 0.0
    %v393 = vmax.f32 %v251, 0.0
    %v394 = vmax.f32 %v256, 0.0
    %v395 = vmax.f32 %v261, 0.0
    %v396 = vmax.f32 %v266, 0.0
    %v397 = vmax.f32 %v271, 0.0
    %v398 = vmax.f32 %v276, 0.0
    %v399 = vmax.f32 %v281, 0.0
    %v400 = vmax.f32 %v286, 0.0
    %v401 = vmax.f32 %v291, 0.0
    %v402 = vmax.f32 %v296, 0.0
    %v403 = vmax.f32 %v301, 0.0
    %v404 = vmax.f32 %v306, 0.0
    %v405 = vmax.f32 %v311, 0.0
    %v406 = vmax.f32 %v316, 0.0
    %v407 = vmax.f32 %v321, 0.0
    %v408 = vmax.f32 %v326, 0.0
    %v409 = vmax.f32 %v331, 0.0
    %v410 = vmax.f32 %v336, 0.0
    %v411 = vmax.f32 %v341, 0.0
    %v412 = vmax.f32 %v346, 0.0
    %v413 = vmax.f32 %v351, 0.0
    %v414 = vmax.f32 %v356, 0.0
    %v415 = vmax.f32 %v361, 0.0
    %v416 = vmax.f32 %v366, 0.0
    %v417 = vmax.f32 %v371, 0.0
    %v418 = vmax.f32 %v376, 0.0
    %v419 = vmax.f32 %v381, 0.0
    %v420 = vmax.f32 %v386, 0.0
    %v421 = vld [vmem:[%s3] sm:$0xff]
    %v422 = vld [vmem:[%s3 + $0x8] sm:$0xff]
    %v423 = vld [vmem:[%s3 + $0x10] sm:$0xff]
    %v424 = vld [vmem:[%s3 + $0x18] sm:$0xff]
    %v425 = vld [vmem:[%s4] sm:$0x1]
    %v427 = vlaneseq
    %v428 = vshrl.u32 %v427, 7
    %v429 = vsub.s32 0, %v428
    %v430 = vrot.slane %v425, %v429
    %vm432 = vcmask 261120
    %v434 = vsel %vm432, %v389, 0
    %v437 = vsel %vm432, %v390, 0
    %v440 = vsel %vm432, %v391, 0
    %v443 = vsel %vm432, %v392, 0
    %v446 = vsel %vm432, %v393, 0
    %v449 = vsel %vm432, %v394, 0
    %v452 = vsel %vm432, %v395, 0
    %v455 = vsel %vm432, %v396, 0
    %v458 = vsel %vm432, %v397, 0
    %v461 = vsel %vm432, %v398, 0
    %v464 = vsel %vm432, %v399, 0
    %v467 = vsel %vm432, %v400, 0
    %v470 = vsel %vm432, %v401, 0
    %v473 = vsel %vm432, %v402, 0
    %v476 = vsel %vm432, %v403, 0
    %v479 = vsel %vm432, %v404, 0
    %v482 = vsel %vm432, %v405, 0
    %v485 = vsel %vm432, %v406, 0
    %v488 = vsel %vm432, %v407, 0
    %v491 = vsel %vm432, %v408, 0
    %v494 = vsel %vm432, %v409, 0
    %v497 = vsel %vm432, %v410, 0
    %v500 = vsel %vm432, %v411, 0
    %v503 = vsel %vm432, %v412, 0
    %v506 = vsel %vm432, %v413, 0
    %v509 = vsel %vm432, %v414, 0
    %v512 = vsel %vm432, %v415, 0
    %v515 = vsel %vm432, %v416, 0
    %v518 = vsel %vm432, %v417, 0
    %v521 = vsel %vm432, %v418, 0
    %v524 = vsel %vm432, %v419, 0
    %v527 = vsel %vm432, %v420, 0
    %529 = vmatprep.subr.mxu0 0.0
    %530 = vmatpush1.msra.mxu0 0.0
    %531 = vmatprep.subr.mxu0 0.0
    %532 = vmatpush1.msra.mxu0 0.0
    %533 = vmatprep.subr.mxu0 0.0
    %534 = vmatpush1.msra.mxu0 0.0
    %535 = vmatprep.subr.mxu0 0.0
    %536 = vmatpush1.msra.mxu0 0.0
    %537 = vmatprep.subr.mxu0 0.0
    %538 = vmatpush1.msra.mxu0 0.0
    %539 = vmatprep.subr.mxu0 0.0
    %540 = vmatpush1.msra.mxu0 0.0
    %541 = vmatprep.subr.mxu0 0.0
    %542 = vmatpush1.msra.mxu0 0.0
    %543 = vmatprep.subr.mxu0 0.0
    %544 = vmatpush1.msra.mxu0 0.0
    %545 = vmatprep.subr.mxu0 0.0
    %546 = vmatpush1.msra.mxu0 0.0
    %547 = vmatprep.subr.mxu0 0.0
    %548 = vmatpush1.msra.mxu0 0.0
    %549 = vmatprep.subr.mxu0 0.0
    %550 = vmatpush1.msra.mxu0 0.0
    %551 = vmatprep.subr.mxu0 0.0
    %552 = vmatpush1.msra.mxu0 0.0
    %553 = vmatprep.subr.mxu0 0.0
    %554 = vmatpush1.msra.mxu0 %v424
    %555 = vmatprep.subr.mxu0 0.0
    %556 = vmatpush1.msra.mxu0 %v423
    %557 = vmatprep.subr.mxu0 0.0
    %558 = vmatpush1.msra.mxu0 %v422
    %559 = vmatprep.subr.mxu0 0.0
    %560 = vmatpush1.msra.mxu0 %v421
    %561 = vmatprep.subr.mxu0 0.0
    %562 = vmatpush2.msra.mxu0 0.0
    %563 = vmatprep.subr.mxu0 0.0
    %564 = vmatpush2.msra.mxu0 0.0
    %565 = vmatprep.subr.mxu0 0.0
    %566 = vmatpush2.msra.mxu0 0.0
    %567 = vmatprep.subr.mxu0 0.0
    %568 = vmatpush2.msra.mxu0 0.0
    %569 = vmatprep.subr.mxu0 0.0
    %570 = vmatpush2.msra.mxu0 0.0
    %571 = vmatprep.subr.mxu0 0.0
    %572 = vmatpush2.msra.mxu0 0.0
    %573 = vmatprep.subr.mxu0 0.0
    %574 = vmatpush2.msra.mxu0 0.0
    %575 = vmatprep.subr.mxu0 0.0
    %576 = vmatpush2.msra.mxu0 0.0
    %577 = vmatprep.subr.mxu0 0.0
    %578 = vmatpush2.msra.mxu0 0.0
    %579 = vmatprep.subr.mxu0 0.0
    %580 = vmatpush2.msra.mxu0 0.0
    %581 = vmatprep.subr.mxu0 0.0
    %582 = vmatpush2.msra.mxu0 0.0
    %583 = vmatprep.subr.mxu0 0.0
    %584 = vmatpush2.msra.mxu0 0.0
    %585 = vmatprep.subr.mxu0 0.0
    %586 = vmatpush2.msra.mxu0 0.0
    %587 = vmatprep.subr.mxu0 0.0
    %588 = vmatpush2.msra.mxu0 0.0
    %589 = vmatprep.subr.mxu0 0.0
    %590 = vmatpush2.msra.mxu0 0.0
    %591 = vmatprep.subr.mxu0 0.0
    %592 = vmatpush2.msra.mxu0 0.0
    %593 = vmatprep.mubr.f32.mxu0 0.0
    %594 = vmatmul.mubr.f32.gmra.mxu0 %v434
    %v595 = vpop.f32.mrf.mxu0
    %v596 = vadd.f32 %v430, %v595
    %v597 = vpop.f32.mrf.mxu0
    %598 = vmatprep.mubr.f32.mxu0 0.0
    %599 = vmatmul.mubr.f32.gmra.mxu0 %v437
    %v600 = vpop.f32.mrf.mxu0
    %v601 = vadd.f32 %v430, %v600
    %v602 = vpop.f32.mrf.mxu0
    %603 = vmatprep.mubr.f32.mxu0 0.0
    %604 = vmatmul.mubr.f32.gmra.mxu0 %v440
    %v605 = vpop.f32.mrf.mxu0
    %v606 = vadd.f32 %v430, %v605
    %v607 = vpop.f32.mrf.mxu0
    %608 = vmatprep.mubr.f32.mxu0 0.0
    %609 = vmatmul.mubr.f32.gmra.mxu0 %v443
    %v610 = vpop.f32.mrf.mxu0
    %v611 = vadd.f32 %v430, %v610
    %v612 = vpop.f32.mrf.mxu0
    %613 = vmatprep.mubr.f32.mxu0 0.0
    %614 = vmatmul.mubr.f32.gmra.mxu0 %v446
    %v615 = vpop.f32.mrf.mxu0
    %v616 = vadd.f32 %v430, %v615
    %v617 = vpop.f32.mrf.mxu0
    %618 = vmatprep.mubr.f32.mxu0 0.0
    %619 = vmatmul.mubr.f32.gmra.mxu0 %v449
    %v620 = vpop.f32.mrf.mxu0
    %v621 = vadd.f32 %v430, %v620
    %v622 = vpop.f32.mrf.mxu0
    %623 = vmatprep.mubr.f32.mxu0 0.0
    %624 = vmatmul.mubr.f32.gmra.mxu0 %v452
    %v625 = vpop.f32.mrf.mxu0
    %v626 = vadd.f32 %v430, %v625
    %v627 = vpop.f32.mrf.mxu0
    %628 = vmatprep.mubr.f32.mxu0 0.0
    %629 = vmatmul.mubr.f32.gmra.mxu0 %v455
    %v630 = vpop.f32.mrf.mxu0
    %v631 = vadd.f32 %v430, %v630
    %v632 = vpop.f32.mrf.mxu0
    %633 = vmatprep.mubr.f32.mxu0 0.0
    %634 = vmatmul.mubr.f32.gmra.mxu0 %v458
    %v635 = vpop.f32.mrf.mxu0
    %v636 = vadd.f32 %v430, %v635
    %v637 = vpop.f32.mrf.mxu0
    %638 = vmatprep.mubr.f32.mxu0 0.0
    %639 = vmatmul.mubr.f32.gmra.mxu0 %v461
    %v640 = vpop.f32.mrf.mxu0
    %v641 = vadd.f32 %v430, %v640
    %v642 = vpop.f32.mrf.mxu0
    %643 = vmatprep.mubr.f32.mxu0 0.0
    %644 = vmatmul.mubr.f32.gmra.mxu0 %v464
    %v645 = vpop.f32.mrf.mxu0
    %v646 = vadd.f32 %v430, %v645
    %v647 = vpop.f32.mrf.mxu0
    %648 = vmatprep.mubr.f32.mxu0 0.0
    %649 = vmatmul.mubr.f32.gmra.mxu0 %v467
    %v650 = vpop.f32.mrf.mxu0
    %v651 = vadd.f32 %v430, %v650
    %v652 = vpop.f32.mrf.mxu0
    %653 = vmatprep.mubr.f32.mxu0 0.0
    %654 = vmatmul.mubr.f32.gmra.mxu0 %v470
    %v655 = vpop.f32.mrf.mxu0
    %v656 = vadd.f32 %v430, %v655
    %v657 = vpop.f32.mrf.mxu0
    %658 = vmatprep.mubr.f32.mxu0 0.0
    %659 = vmatmul.mubr.f32.gmra.mxu0 %v473
    %v660 = vpop.f32.mrf.mxu0
    %v661 = vadd.f32 %v430, %v660
    %v662 = vpop.f32.mrf.mxu0
    %663 = vmatprep.mubr.f32.mxu0 0.0
    %664 = vmatmul.mubr.f32.gmra.mxu0 %v476
    %v665 = vpop.f32.mrf.mxu0
    %v666 = vadd.f32 %v430, %v665
    %v667 = vpop.f32.mrf.mxu0
    %668 = vmatprep.mubr.f32.mxu0 0.0
    %669 = vmatmul.mubr.f32.gmra.mxu0 %v479
    %v670 = vpop.f32.mrf.mxu0
    %v671 = vadd.f32 %v430, %v670
    %v672 = vpop.f32.mrf.mxu0
    %673 = vmatprep.mubr.f32.mxu0 0.0
    %674 = vmatmul.mubr.f32.gmra.mxu0 %v482
    %v675 = vpop.f32.mrf.mxu0
    %v676 = vadd.f32 %v430, %v675
    %v677 = vpop.f32.mrf.mxu0
    %678 = vmatprep.mubr.f32.mxu0 0.0
    %679 = vmatmul.mubr.f32.gmra.mxu0 %v485
    %v680 = vpop.f32.mrf.mxu0
    %v681 = vadd.f32 %v430, %v680
    %v682 = vpop.f32.mrf.mxu0
    %683 = vmatprep.mubr.f32.mxu0 0.0
    %684 = vmatmul.mubr.f32.gmra.mxu0 %v488
    %v685 = vpop.f32.mrf.mxu0
    %v686 = vadd.f32 %v430, %v685
    %v687 = vpop.f32.mrf.mxu0
    %688 = vmatprep.mubr.f32.mxu0 0.0
    %689 = vmatmul.mubr.f32.gmra.mxu0 %v491
    %v690 = vpop.f32.mrf.mxu0
    %v691 = vadd.f32 %v430, %v690
    %v692 = vpop.f32.mrf.mxu0
    %693 = vmatprep.mubr.f32.mxu0 0.0
    %694 = vmatmul.mubr.f32.gmra.mxu0 %v494
    %v695 = vpop.f32.mrf.mxu0
    %v696 = vadd.f32 %v430, %v695
    %v697 = vpop.f32.mrf.mxu0
    %698 = vmatprep.mubr.f32.mxu0 0.0
    %699 = vmatmul.mubr.f32.gmra.mxu0 %v497
    %v700 = vpop.f32.mrf.mxu0
    %v701 = vadd.f32 %v430, %v700
    %v702 = vpop.f32.mrf.mxu0
    %703 = vmatprep.mubr.f32.mxu0 0.0
    %704 = vmatmul.mubr.f32.gmra.mxu0 %v500
    %v705 = vpop.f32.mrf.mxu0
    %v706 = vadd.f32 %v430, %v705
    %v707 = vpop.f32.mrf.mxu0
    %708 = vmatprep.mubr.f32.mxu0 0.0
    %709 = vmatmul.mubr.f32.gmra.mxu0 %v503
    %v710 = vpop.f32.mrf.mxu0
    %v711 = vadd.f32 %v430, %v710
    %v712 = vpop.f32.mrf.mxu0
    %713 = vmatprep.mubr.f32.mxu0 0.0
    %714 = vmatmul.mubr.f32.gmra.mxu0 %v506
    %v715 = vpop.f32.mrf.mxu0
    %v716 = vadd.f32 %v430, %v715
    %v717 = vpop.f32.mrf.mxu0
    %718 = vmatprep.mubr.f32.mxu0 0.0
    %719 = vmatmul.mubr.f32.gmra.mxu0 %v509
    %v720 = vpop.f32.mrf.mxu0
    %v721 = vadd.f32 %v430, %v720
    %v722 = vpop.f32.mrf.mxu0
    %723 = vmatprep.mubr.f32.mxu0 0.0
    %724 = vmatmul.mubr.f32.gmra.mxu0 %v512
    %v725 = vpop.f32.mrf.mxu0
    %v726 = vadd.f32 %v430, %v725
    %v727 = vpop.f32.mrf.mxu0
    %728 = vmatprep.mubr.f32.mxu0 0.0
    %729 = vmatmul.mubr.f32.gmra.mxu0 %v515
    %v730 = vpop.f32.mrf.mxu0
    %v731 = vadd.f32 %v430, %v730
    %v732 = vpop.f32.mrf.mxu0
    %733 = vmatprep.mubr.f32.mxu0 0.0
    %734 = vmatmul.mubr.f32.gmra.mxu0 %v518
    %v735 = vpop.f32.mrf.mxu0
    %v736 = vadd.f32 %v430, %v735
    %v737 = vpop.f32.mrf.mxu0
    %738 = vmatprep.mubr.f32.mxu0 0.0
    %739 = vmatmul.mubr.f32.gmra.mxu0 %v521
    %v740 = vpop.f32.mrf.mxu0
    %v741 = vadd.f32 %v430, %v740
    %v742 = vpop.f32.mrf.mxu0
    %743 = vmatprep.mubr.f32.mxu0 0.0
    %744 = vmatmul.mubr.f32.gmra.mxu0 %v524
    %v745 = vpop.f32.mrf.mxu0
    %v746 = vadd.f32 %v430, %v745
    %v747 = vpop.f32.mrf.mxu0
    %748 = vmatprep.mubr.f32.mxu0 0.0
    %749 = vmatmul.mubr.f32.gmra.mxu0 %v527
    %v750 = vpop.f32.mrf.mxu0
    %v751 = vadd.f32 %v430, %v750
    %v752 = vpop.f32.mrf.mxu0
    %753 = vdwg.mxu0
    %754 = vst.msk [vmem:[%s5] sm:$0xff] %vm63, %v596
    %755 = vst.msk [vmem:[%s5 + $0x8] sm:$0xff] %vm63, %v601
    %756 = vst.msk [vmem:[%s5 + $0x10] sm:$0xff] %vm63, %v606
    %757 = vst.msk [vmem:[%s5 + $0x18] sm:$0xff] %vm63, %v611
    %758 = vst.msk [vmem:[%s5 + $0x20] sm:$0xff] %vm63, %v616
    %759 = vst.msk [vmem:[%s5 + $0x28] sm:$0xff] %vm63, %v621
    %760 = vst.msk [vmem:[%s5 + $0x30] sm:$0xff] %vm63, %v626
    %761 = vst.msk [vmem:[%s5 + $0x38] sm:$0xff] %vm63, %v631
    %762 = vst.msk [vmem:[%s5 + $0x40] sm:$0xff] %vm63, %v636
    %763 = vst.msk [vmem:[%s5 + $0x48] sm:$0xff] %vm63, %v641
    %764 = vst.msk [vmem:[%s5 + $0x50] sm:$0xff] %vm63, %v646
    %765 = vst.msk [vmem:[%s5 + $0x58] sm:$0xff] %vm63, %v651
    %766 = vst.msk [vmem:[%s5 + $0x60] sm:$0xff] %vm63, %v656
    %767 = vst.msk [vmem:[%s5 + $0x68] sm:$0xff] %vm63, %v661
    %768 = vst.msk [vmem:[%s5 + $0x70] sm:$0xff] %vm63, %v666
    %769 = vst.msk [vmem:[%s5 + $0x78] sm:$0xff] %vm63, %v671
    %770 = vst.msk [vmem:[%s5 + $0x80] sm:$0xff] %vm63, %v676
    %771 = vst.msk [vmem:[%s5 + $0x88] sm:$0xff] %vm63, %v681
    %772 = vst.msk [vmem:[%s5 + $0x90] sm:$0xff] %vm63, %v686
    %773 = vst.msk [vmem:[%s5 + $0x98] sm:$0xff] %vm63, %v691
    %774 = vst.msk [vmem:[%s5 + $0xa0] sm:$0xff] %vm63, %v696
    %775 = vst.msk [vmem:[%s5 + $0xa8] sm:$0xff] %vm63, %v701
    %776 = vst.msk [vmem:[%s5 + $0xb0] sm:$0xff] %vm63, %v706
    %777 = vst.msk [vmem:[%s5 + $0xb8] sm:$0xff] %vm63, %v711
    %778 = vst.msk [vmem:[%s5 + $0xc0] sm:$0xff] %vm63, %v716
    %779 = vst.msk [vmem:[%s5 + $0xc8] sm:$0xff] %vm63, %v721
    %780 = vst.msk [vmem:[%s5 + $0xd0] sm:$0xff] %vm63, %v726
    %781 = vst.msk [vmem:[%s5 + $0xd8] sm:$0xff] %vm63, %v731
    %782 = vst.msk [vmem:[%s5 + $0xe0] sm:$0xff] %vm63, %v736
    %783 = vst.msk [vmem:[%s5 + $0xe8] sm:$0xff] %vm63, %v741
    %784 = vst.msk [vmem:[%s5 + $0xf0] sm:$0xff] %vm63, %v746
    %785 = vst.msk [vmem:[%s5 + $0xf8] sm:$0xff] %vm63, %v751
    %s786 = smul.u32 0, 256
    %v787 = vlaneseq
    %v788 = vshrl.u32 %v787, 7
    %v789 = vadd.s32 %v788, 8
    %v790 = vadd.s32 %v788, 16
    %v791 = vadd.s32 %v788, 24
    %v792 = vadd.s32 %v788, 32
    %v793 = vadd.s32 %v788, 40
    %v794 = vadd.s32 %v788, 48
    %v795 = vadd.s32 %v788, 56
    %v796 = vadd.s32 %v788, 64
    %v797 = vadd.s32 %v788, 72
    %v798 = vadd.s32 %v788, 80
    %v799 = vadd.s32 %v788, 88
    %v800 = vadd.s32 %v788, 96
    %v801 = vadd.s32 %v788, 104
    %v802 = vadd.s32 %v788, 112
    %v803 = vadd.s32 %v788, 120
    %v804 = vadd.s32 %v788, 128
    %v805 = vadd.s32 %v788, 136
    %v806 = vadd.s32 %v788, 144
    %v807 = vadd.s32 %v788, 152
    %v808 = vadd.s32 %v788, 160
    %v809 = vadd.s32 %v788, 168
    %v810 = vadd.s32 %v788, 176
    %v811 = vadd.s32 %v788, 184
    %v812 = vadd.s32 %v788, 192
    %v813 = vadd.s32 %v788, 200
    %v814 = vadd.s32 %v788, 208
    %v815 = vadd.s32 %v788, 216
    %v816 = vadd.s32 %v788, 224
    %v817 = vadd.s32 %v788, 232
    %v818 = vadd.s32 %v788, 240
    %v819 = vadd.s32 %v788, 248
    %v820 = vstv %s786
    %v821 = vadd.s32 %v820, %v788
    %v822 = vadd.s32 %v820, %v789
    %v823 = vadd.s32 %v820, %v790
    %v824 = vadd.s32 %v820, %v791
    %v825 = vadd.s32 %v820, %v792
    %v826 = vadd.s32 %v820, %v793
    %v827 = vadd.s32 %v820, %v794
    %v828 = vadd.s32 %v820, %v795
    %v829 = vadd.s32 %v820, %v796
    %v830 = vadd.s32 %v820, %v797
    %v831 = vadd.s32 %v820, %v798
    %v832 = vadd.s32 %v820, %v799
    %v833 = vadd.s32 %v820, %v800
    %v834 = vadd.s32 %v820, %v801
    %v835 = vadd.s32 %v820, %v802
    %v836 = vadd.s32 %v820, %v803
    %v837 = vadd.s32 %v820, %v804
    %v838 = vadd.s32 %v820, %v805
    %v839 = vadd.s32 %v820, %v806
    %v840 = vadd.s32 %v820, %v807
    %v841 = vadd.s32 %v820, %v808
    %v842 = vadd.s32 %v820, %v809
    %v843 = vadd.s32 %v820, %v810
    %v844 = vadd.s32 %v820, %v811
    %v845 = vadd.s32 %v820, %v812
    %v846 = vadd.s32 %v820, %v813
    %v847 = vadd.s32 %v820, %v814
    %v848 = vadd.s32 %v820, %v815
    %v849 = vadd.s32 %v820, %v816
    %v850 = vadd.s32 %v820, %v817
    %v851 = vadd.s32 %v820, %v818
    %v852 = vadd.s32 %v820, %v819
    %vm853 = vcmp.lt.s32.totalorder %v821, 256
    %vm854 = vcmp.lt.s32.totalorder %v822, 256
    %vm855 = vcmp.lt.s32.totalorder %v823, 256
    %vm856 = vcmp.lt.s32.totalorder %v824, 256
    %vm857 = vcmp.lt.s32.totalorder %v825, 256
    %vm858 = vcmp.lt.s32.totalorder %v826, 256
    %vm859 = vcmp.lt.s32.totalorder %v827, 256
    %vm860 = vcmp.lt.s32.totalorder %v828, 256
    %vm861 = vcmp.lt.s32.totalorder %v829, 256
    %vm862 = vcmp.lt.s32.totalorder %v830, 256
    %vm863 = vcmp.lt.s32.totalorder %v831, 256
    %vm864 = vcmp.lt.s32.totalorder %v832, 256
    %vm865 = vcmp.lt.s32.totalorder %v833, 256
    %vm866 = vcmp.lt.s32.totalorder %v834, 256
    %vm867 = vcmp.lt.s32.totalorder %v835, 256
    %vm868 = vcmp.lt.s32.totalorder %v836, 256
    %vm869 = vcmp.lt.s32.totalorder %v837, 256
    %vm870 = vcmp.lt.s32.totalorder %v838, 256
    %vm871 = vcmp.lt.s32.totalorder %v839, 256
    %vm872 = vcmp.lt.s32.totalorder %v840, 256
    %vm873 = vcmp.lt.s32.totalorder %v841, 256
    %vm874 = vcmp.lt.s32.totalorder %v842, 256
    %vm875 = vcmp.lt.s32.totalorder %v843, 256
    %vm876 = vcmp.lt.s32.totalorder %v844, 256
    %vm877 = vcmp.lt.s32.totalorder %v845, 256
    %vm878 = vcmp.lt.s32.totalorder %v846, 256
    %vm879 = vcmp.lt.s32.totalorder %v847, 256
    %vm880 = vcmp.lt.s32.totalorder %v848, 256
    %vm881 = vcmp.lt.s32.totalorder %v849, 256
    %vm882 = vcmp.lt.s32.totalorder %v850, 256
    %vm883 = vcmp.lt.s32.totalorder %v851, 256
    %vm884 = vcmp.lt.s32.totalorder %v852, 256
    %v885 = vsel %vm853, 1, 0
    %v886 = vsel %vm854, 1, 0
    %v887 = vsel %vm855, 1, 0
    %v888 = vsel %vm856, 1, 0
    %v889 = vsel %vm857, 1, 0
    %v890 = vsel %vm858, 1, 0
    %v891 = vsel %vm859, 1, 0
    %v892 = vsel %vm860, 1, 0
    %v893 = vsel %vm861, 1, 0
    %v894 = vsel %vm862, 1, 0
    %v895 = vsel %vm863, 1, 0
    %v896 = vsel %vm864, 1, 0
    %v897 = vsel %vm865, 1, 0
    %v898 = vsel %vm866, 1, 0
    %v899 = vsel %vm867, 1, 0
    %v900 = vsel %vm868, 1, 0
    %v901 = vsel %vm869, 1, 0
    %v902 = vsel %vm870, 1, 0
    %v903 = vsel %vm871, 1, 0
    %v904 = vsel %vm872, 1, 0
    %v905 = vsel %vm873, 1, 0
    %v906 = vsel %vm874, 1, 0
    %v907 = vsel %vm875, 1, 0
    %v908 = vsel %vm876, 1, 0
    %v909 = vsel %vm877, 1, 0
    %v910 = vsel %vm878, 1, 0
    %v911 = vsel %vm879, 1, 0
    %v912 = vsel %vm880, 1, 0
    %v913 = vsel %vm881, 1, 0
    %v914 = vsel %vm882, 1, 0
    %v915 = vsel %vm883, 1, 0
    %v916 = vsel %vm884, 1, 0
    %v917 = vcvt.s32.f32 %v885
    %v918 = vcvt.s32.f32 %v886
    %v919 = vcvt.s32.f32 %v887
    %v920 = vcvt.s32.f32 %v888
    %v921 = vcvt.s32.f32 %v889
    %v922 = vcvt.s32.f32 %v890
    %v923 = vcvt.s32.f32 %v891
    %v924 = vcvt.s32.f32 %v892
    %v925 = vcvt.s32.f32 %v893
    %v926 = vcvt.s32.f32 %v894
    %v927 = vcvt.s32.f32 %v895
    %v928 = vcvt.s32.f32 %v896
    %v929 = vcvt.s32.f32 %v897
    %v930 = vcvt.s32.f32 %v898
    %v931 = vcvt.s32.f32 %v899
    %v932 = vcvt.s32.f32 %v900
    %v933 = vcvt.s32.f32 %v901
    %v934 = vcvt.s32.f32 %v902
    %v935 = vcvt.s32.f32 %v903
    %v936 = vcvt.s32.f32 %v904
    %v937 = vcvt.s32.f32 %v905
    %v938 = vcvt.s32.f32 %v906
    %v939 = vcvt.s32.f32 %v907
    %v940 = vcvt.s32.f32 %v908
    %v941 = vcvt.s32.f32 %v909
    %v942 = vcvt.s32.f32 %v910
    %v943 = vcvt.s32.f32 %v911
    %v944 = vcvt.s32.f32 %v912
    %v945 = vcvt.s32.f32 %v913
    %v946 = vcvt.s32.f32 %v914
    %v947 = vcvt.s32.f32 %v915
    %v948 = vcvt.s32.f32 %v916
    %v949 = vmul.f32 %v389, %v917
    %v950 = vmul.f32 %v390, %v918
    %v951 = vmul.f32 %v391, %v919
    %v952 = vmul.f32 %v392, %v920
    %v953 = vmul.f32 %v393, %v921
    %v954 = vmul.f32 %v394, %v922
    %v955 = vmul.f32 %v395, %v923
    %v956 = vmul.f32 %v396, %v924
    %v957 = vmul.f32 %v397, %v925
    %v958 = vmul.f32 %v398, %v926
    %v959 = vmul.f32 %v399, %v927
    %v960 = vmul.f32 %v400, %v928
    %v961 = vmul.f32 %v401, %v929
    %v962 = vmul.f32 %v402, %v930
    %v963 = vmul.f32 %v403, %v931
    %v964 = vmul.f32 %v404, %v932
    %v965 = vmul.f32 %v405, %v933
    %v966 = vmul.f32 %v406, %v934
    %v967 = vmul.f32 %v407, %v935
    %v968 = vmul.f32 %v408, %v936
    %v969 = vmul.f32 %v409, %v937
    %v970 = vmul.f32 %v410, %v938
    %v971 = vmul.f32 %v411, %v939
    %v972 = vmul.f32 %v412, %v940
    %v973 = vmul.f32 %v413, %v941
    %v974 = vmul.f32 %v414, %v942
    %v975 = vmul.f32 %v415, %v943
    %v976 = vmul.f32 %v416, %v944
    %v977 = vmul.f32 %v417, %v945
    %v978 = vmul.f32 %v418, %v946
    %v979 = vmul.f32 %v419, %v947
    %v980 = vmul.f32 %v420, %v948
    %v981 = vsel %vm432, %v949, 0.0
    %v982 = vsel %vm432, %v950, 0.0
    %v983 = vadd.f32 %v981, %v982
    %v984 = vsel %vm432, %v951, 0.0
    %v985 = vadd.f32 %v983, %v984
    %v986 = vsel %vm432, %v952, 0.0
    %v987 = vadd.f32 %v985, %v986
    %v988 = vsel %vm432, %v953, 0.0
    %v989 = vadd.f32 %v987, %v988
    %v990 = vsel %vm432, %v954, 0.0
    %v991 = vadd.f32 %v989, %v990
    %v992 = vsel %vm432, %v955, 0.0
    %v993 = vadd.f32 %v991, %v992
    %v994 = vsel %vm432, %v956, 0.0
    %v995 = vadd.f32 %v993, %v994
    %v996 = vsel %vm432, %v957, 0.0
    %v997 = vadd.f32 %v995, %v996
    %v998 = vsel %vm432, %v958, 0.0
    %v999 = vadd.f32 %v997, %v998
    %v1000 = vsel %vm432, %v959, 0.0
    %v1001 = vadd.f32 %v999, %v1000
    %v1002 = vsel %vm432, %v960, 0.0
    %v1003 = vadd.f32 %v1001, %v1002
    %v1004 = vsel %vm432, %v961, 0.0
    %v1005 = vadd.f32 %v1003, %v1004
    %v1006 = vsel %vm432, %v962, 0.0
    %v1007 = vadd.f32 %v1005, %v1006
    %v1008 = vsel %vm432, %v963, 0.0
    %v1009 = vadd.f32 %v1007, %v1008
    %v1010 = vsel %vm432, %v964, 0.0
    %v1011 = vadd.f32 %v1009, %v1010
    %v1012 = vsel %vm432, %v965, 0.0
    %v1013 = vadd.f32 %v1011, %v1012
    %v1014 = vsel %vm432, %v966, 0.0
    %v1015 = vadd.f32 %v1013, %v1014
    %v1016 = vsel %vm432, %v967, 0.0
    %v1017 = vadd.f32 %v1015, %v1016
    %v1018 = vsel %vm432, %v968, 0.0
    %v1019 = vadd.f32 %v1017, %v1018
    %v1020 = vsel %vm432, %v969, 0.0
    %v1021 = vadd.f32 %v1019, %v1020
    %v1022 = vsel %vm432, %v970, 0.0
    %v1023 = vadd.f32 %v1021, %v1022
    %v1024 = vsel %vm432, %v971, 0.0
    %v1025 = vadd.f32 %v1023, %v1024
    %v1026 = vsel %vm432, %v972, 0.0
    %v1027 = vadd.f32 %v1025, %v1026
    %v1028 = vsel %vm432, %v973, 0.0
    %v1029 = vadd.f32 %v1027, %v1028
    %v1030 = vsel %vm432, %v974, 0.0
    %v1031 = vadd.f32 %v1029, %v1030
    %v1032 = vsel %vm432, %v975, 0.0
    %v1033 = vadd.f32 %v1031, %v1032
    %v1034 = vsel %vm432, %v976, 0.0
    %v1035 = vadd.f32 %v1033, %v1034
    %v1036 = vsel %vm432, %v977, 0.0
    %v1037 = vadd.f32 %v1035, %v1036
    %v1038 = vsel %vm432, %v978, 0.0
    %v1039 = vadd.f32 %v1037, %v1038
    %v1040 = vsel %vm432, %v979, 0.0
    %v1041 = vadd.f32 %v1039, %v1040
    %v1042 = vsel %vm432, %v980, 0.0
    %v1043 = vadd.f32 %v1041, %v1042
    %v1044 = vrot.slane %v1043, 4
    %v1045 = vadd.f32 %v1043, %v1044
    %v1046 = vrot.slane %v1045, 2
    %v1047 = vadd.f32 %v1045, %v1046
    %v1048 = vrot.slane %v1047, 1
    %v1049 = vadd.f32 %v1047, %v1048
    %vm1050 = vcmask 253952
    %1051 = vst.msk [vmem:[#allocation2] sm:$0x1] %vm1050, %v1049
    // Predicated region
    $region22: #{tpu_custom_call.1} parent=1 // pred_check
      _
    $region23: #{tpu_custom_call.1} parent=1 // pred_check_branch
      %1053 = sbr.rel (0) target = $region25
    $region24: #{tpu_custom_call.1} parent=1 // pred_region
      _
    $region25: #{tpu_custom_call.1} parent=1 // pred_fallthru
      _
    // Predicated region
    $region26: #{tpu_custom_call.1} parent=1 // pred_check
      _
    $region27: #{tpu_custom_call.1} parent=1 // pred_check_branch
      %1055 = sbr.rel (0) target = $region29
    $region28: #{tpu_custom_call.1} parent=1 // pred_region
      %s1057 = ssub.s32 16, 16
      %1058 = vsyncadd [#allocation3], %s1057
      %s1060 = sshll.u32 [#allocation2], 4
      %s1061 = int_to_ptr.vmem [resolvable:$true] %s1060
      %1063 = dma.vmem_to_hbm [thread:$0]  %s1061, 16, %s6, [#allocation3]
    $region29: #{tpu_custom_call.1} parent=1 // pred_fallthru
      _
    // Predicated region
    $region30: #{tpu_custom_call.1} parent=1 // pred_check
      _
    $region31: #{tpu_custom_call.1} parent=1 // pred_check_branch
      %1065 = sbr.rel (0) target = $region33
    $region32: #{tpu_custom_call.1} parent=1 // pred_region
      _
    $region33: #{tpu_custom_call.1} parent=1 // pred_fallthru
      _
    // Predicated region
    $region34: #{tpu_custom_call.1} parent=1 // pred_check
      _
    $region35: #{tpu_custom_call.1} parent=1 // pred_check_branch
      %1067 = sbr.rel (0) target = $region37
    $region36: #{tpu_custom_call.1} parent=1 // pred_region
      %1068 = dma.done [#allocation3], 16
    $region37: #{tpu_custom_call.1} parent=1 // pred_fallthru
      _
    %1069 = vsyncpa [#allocation3], 1

</llo_original>
